<compile_context>
chip_gen: v5e
topology: v5e:2x2
jax: 0.10.0
libtpu: 0.0.40
codegen_flags: <defaults>
</compile_context>

<pallas_src>
import jax
import jax.numpy as jnp
from jax import lax
from jax.experimental import pallas as pl
from jax.experimental.pallas import tpu as pltpu


def _proj_kernel(x_ref, w_ref, b_ref, o_ref):
    """Projection + bias for one token tile.

    x_ref : (K, tm)  im2col'd patch features (matmul dtype)
    w_ref : (E, K)   projection weight (matmul dtype)
    b_ref : (E, 1)   conv bias, f32
    o_ref : (E, tm)  channel-first output tile (lane-dense stores)
    """
    y = jnp.dot(w_ref[...], x_ref[...].astype(w_ref.dtype),
                preferred_element_type=jnp.float32)
    y = y + b_ref[...]
    o_ref[...] = y.astype(o_ref.dtype)


def _proj_norm_kernel(x_ref, w_ref, b_ref, g_ref, bt_ref, o_ref):
    """Projection + bias + fused LayerNorm(embed_dim) for one token tile.

    Embed dim sits on the sublane axis of the (E, tm) tile, so the LayerNorm
    reduction is a cross-sublane reduce (XLU); per-token math stays f32.
    """
    y = jnp.dot(w_ref[...], x_ref[...].astype(w_ref.dtype),
                preferred_element_type=jnp.float32)
    y = y + b_ref[...]
    # PyTorch nn.LayerNorm: biased variance, eps = 1e-5, over embed_dim.
    mean = jnp.mean(y, axis=0, keepdims=True)          # (1, tm)
    c = y - mean
    var = jnp.mean(c * c, axis=0, keepdims=True)       # (1, tm)
    y = c * lax.rsqrt(var + 1e-5)
    y = y * g_ref[...] + bt_ref[...]
    o_ref[...] = y.astype(o_ref.dtype)


def patch_embed3d_forward(x, weight, bias, gamma=None, beta=None, *,
                          tm=1024, matmul_dtype=jnp.bfloat16):
    """Pallas-backed equivalent of PatchEmbed3D.forward.

    Args:
      x:      (B, C_in, D, H, W) float32  (NCDHW, as the PyTorch module)
      weight: (E, C_in, pd, ph, pw)       Conv3d weight
      bias:   (E,)                        Conv3d bias
      gamma, beta: optional (E,)          LayerNorm params (norm_layer branch)
      tm:     token tile size (lanes per grid step), sweep 512-2048
      matmul_dtype: dtype of the MXU operands (bf16 on v6e/v7x, f32 for exact)
    Returns:
      (B, E, D', H', W') with D' = ceil(D/pd), etc. (module pads right).
    """
    B, C, D, H, W = x.shape
    E = weight.shape[0]
    pd, ph, pw = weight.shape[2:]

    # pad right to multiples of the patch size (matches the module's F.pad calls)
    pad_d, pad_h, pad_w = (-D) % pd, (-H) % ph, (-W) % pw
    if pad_d or pad_h or pad_w:
        x = jnp.pad(x, ((0, 0), (0, 0), (0, pad_d), (0, pad_h), (0, pad_w)))
    Dp, Hp, Wp = D + pad_d, H + pad_h, W + pad_w
    Dn, Hn, Wn = Dp // pd, Hp // ph, Wp // pw
    K = C * pd * ph * pw
    ntok = Dn * Hn * Wn

    # im2col in feature-major layout: (B, C, Dn, pd, Hn, ph, Wn, pw)
    #   -> (B, C, pd, ph, pw, Dn, Hn, Wn) -> (B, K, ntok).
    # Single XLA transpose pass; the bf16 convert fuses into it.
    xr = x.reshape(B, C, Dn, pd, Hn, ph, Wn, pw)
    xr = xr.transpose(0, 1, 3, 5, 7, 2, 4, 6)
    x2d = xr.reshape(B, K, ntok)
    if x2d.dtype != matmul_dtype:
        x2d = x2d.astype(matmul_dtype)

    # Parameters: flatten the tiny weight once, hoist all f32 casts.
    w2d = weight.reshape(E, K).astype(matmul_dtype)        # (E, K), resident
    bcol = bias.reshape(E, 1).astype(jnp.float32)          # (E, 1)

    # Tile size: keep the "block equals full dim" invariant when clamping, so
    # the sublane / lane divisibility rules are always satisfied.
    tm_eff = tm if ntok >= tm else ntok
    grid = (B, pl.cdiv(ntok, tm_eff))

    in_specs = [
        pl.BlockSpec((None, K, tm_eff), lambda b, i: (b, 0, i)),   # token tile
        pl.BlockSpec((E, K), lambda b, i: (0, 0)),                 # weight (resident)
        pl.BlockSpec((E, 1), lambda b, i: (0, 0)),                 # bias
    ]
    operands = [x2d, w2d, bcol]
    if gamma is not None:
        assert beta is not None
        kernel = _proj_norm_kernel
        in_specs += [pl.BlockSpec((E, 1), lambda b, i: (0, 0)),
                     pl.BlockSpec((E, 1), lambda b, i: (0, 0))]
        operands += [gamma.reshape(E, 1).astype(jnp.float32),
                     beta.reshape(E, 1).astype(jnp.float32)]
    else:
        kernel = _proj_kernel

    out = pl.pallas_call(
        kernel,
        out_shape=jax.ShapeDtypeStruct((B, E, ntok), x.dtype),
        grid_spec=pltpu.PrefetchScalarGridSpec(
            num_scalar_prefetch=0,
            grid=grid,
            in_specs=in_specs,
            out_specs=pl.BlockSpec((None, E, tm_eff), lambda b, i: (b, 0, i)),
        ),
        compiler_params=pltpu.CompilerParams(
            dimension_semantics=("parallel", "parallel"),
            vmem_limit_bytes=32 * 1024 * 1024),
    )(*operands)

    # channel-first output: only a free reshape remains (no transpose pass).
    return out.reshape(B, E, Dn, Hn, Wn)


def _reference_forward(x, weight, bias, gamma=None, beta=None):
    """Plain-JAX reference mirroring the PyTorch module (for verification)."""
    B, C, D, H, W = x.shape
    pd, ph, pw = weight.shape[2:]
    x = jnp.pad(x, ((0, 0), (0, 0), (0, (-D) % pd), (0, (-H) % ph), (0, (-W) % pw)))
    out = lax.conv_general_dilated(
        x, weight, window_strides=(pd, ph, pw), padding="VALID",
        dimension_numbers=("NCDHW", "OIDHW", "NCDHW"),
        precision=lax.Precision.HIGHEST)
    out = out + bias.reshape(1, -1, 1, 1, 1)
    if gamma is not None:
        mean = jnp.mean(out, axis=1, keepdims=True)
        var = jnp.mean((out - mean) ** 2, axis=1, keepdims=True)
        out = (out - mean) / jnp.sqrt(var + 1e-5)
        out = out * gamma.reshape(1, -1, 1, 1, 1) + beta.reshape(1, -1, 1, 1, 1)
    return out


if __name__ == "__main__":
    # Small but representative: default patch (2,4,4), in_chans=3, embed_dim=96.
    # D/H/W deliberately NOT divisible by the patch size to exercise the pad path.
    B, C_in, D, H, W = 2, 3, 3, 15, 63
    patch_size = (2, 4, 4)
    embed_dim = 96

    key = jax.random.PRNGKey(0)
    kx, kw, kb = jax.random.split(key, 3)
    x = jax.random.normal(kx, (B, C_in, D, H, W), dtype=jnp.float32)

    fan_in = C_in * patch_size[0] * patch_size[1] * patch_size[2]
    bound = 1.0 / (fan_in ** 0.5)
    weight = jax.random.uniform(kw, (embed_dim, C_in) + patch_size,
                                jnp.float32, -bound, bound)
    bias = jax.random.uniform(kb, (embed_dim,), jnp.float32, -bound, bound)
    gamma = jnp.ones((embed_dim,), jnp.float32)   # LayerNorm defaults
    beta = jnp.zeros((embed_dim,), jnp.float32)

    # --- default module config (norm_layer=None), bf16 MXU operands ----------
    out = jax.block_until_ready(
        patch_embed3d_forward(x, weight, bias, matmul_dtype=jnp.bfloat16))
    ref = _reference_forward(x, weight, bias)
    assert out.shape == ref.shape == (B, embed_dim, 2, 4, 16), out.shape
    # bf16 operands -> loose sanity tolerance vs the f32 reference.
    assert jnp.allclose(out, ref, atol=1e-1, rtol=1e-1), (
        float(jnp.max(jnp.abs(out - ref))))

    # --- f32 operands: tight check of the kernel semantics -------------------
    out32 = jax.block_until_ready(
        patch_embed3d_forward(x, weight, bias, matmul_dtype=jnp.float32))
    assert jnp.allclose(out32, ref, atol=1e-4, rtol=1e-4), (
        float(jnp.max(jnp.abs(out32 - ref))))

    # --- norm_layer=LayerNorm config: fused (sublane-axis) LN in-kernel -------
    refn = _reference_forward(x, weight, bias, gamma, beta)
    outn32 = jax.block_until_ready(
        patch_embed3d_forward(x, weight, bias, gamma, beta,
                              matmul_dtype=jnp.float32))
    assert jnp.allclose(outn32, refn, atol=1e-4, rtol=1e-4), (
        float(jnp.max(jnp.abs(outn32 - refn))))

    outn_bf16 = jax.block_until_ready(
        patch_embed3d_forward(x, weight, bias, gamma, beta,
                              matmul_dtype=jnp.bfloat16))
    assert jnp.allclose(outn_bf16, refn, atol=1e-1, rtol=1e-1), (
        float(jnp.max(jnp.abs(outn_bf16 - refn))))

    # --- partial last token tile (store masking) ------------------------------
    W2 = 95                                           # -> Wn = 24, ntok = 192
    x2 = jax.random.normal(jax.random.PRNGKey(1), (B, C_in, D, H, W2), jnp.float32)
    out_part = jax.block_until_ready(
        patch_embed3d_forward(x2, weight, bias, tm=128, matmul_dtype=jnp.float32))
    ref_part = _reference_forward(x2, weight, bias)
    assert out_part.shape == ref_part.shape == (B, embed_dim, 2, 4, 24)
    assert jnp.allclose(out_part, ref_part, atol=1e-4, rtol=1e-4), (
        float(jnp.max(jnp.abs(out_part - ref_part))))

    print("KERNEL_OK")
</pallas_src>

<mosaic_0001>
module attributes {stable_mosaic.version = 11 : i64} {
  func.func @_proj_kernel(%arg0: i32, %arg1: i32, %arg2: memref<1x96x128xbf16, #tpu.memory_space<vmem>>, %arg3: memref<96x96xbf16, #tpu.memory_space<vmem>>, %arg4: memref<96x1xf32, #tpu.memory_space<vmem>>, %arg5: memref<1x96x128xf32, #tpu.memory_space<vmem>>) attributes {dimension_semantics = [#tpu.dimension_semantics<parallel>, #tpu.dimension_semantics<parallel>], iteration_bounds = array<i64: 2, 1>, scalar_prefetch = 0 : i64, scratch_operands = 0 : i64, tpu.core_type = #tpu.core_type<tc>, window_params = [{transform_indices = @transform_0, window_bounds = array<i64: 1, 96, 128>}, {pipeline_mode = #tpu.pipeline_mode<synchronous>, transform_indices = @transform_1, window_bounds = array<i64: 96, 96>}, {pipeline_mode = #tpu.pipeline_mode<synchronous>, transform_indices = @transform_2, window_bounds = array<i64: 96, 1>}, {transform_indices = @transform_3, window_bounds = array<i64: 1, 96, 128>}]} {
    %c0 = arith.constant 0 : index
    %c0_0 = arith.constant 0 : index
    %0 = vector.load %arg3[%c0, %c0_0] : memref<96x96xbf16, #tpu.memory_space<vmem>>, vector<96x96xbf16>
    %c0_1 = arith.constant 0 : index
    %c0_2 = arith.constant 0 : index
    %c0_3 = arith.constant 0 : index
    %1 = vector.load %arg2[%c0_1, %c0_2, %c0_3] : memref<1x96x128xbf16, #tpu.memory_space<vmem>>, vector<1x96x128xbf16>
    %2 = vector.shape_cast %1 : vector<1x96x128xbf16> to vector<96x128xbf16>
    %cst = arith.constant dense<0.000000e+00> : vector<96x128xf32>
    %3 = tpu.matmul %0, %2, %cst {dimension_numbers = #tpu.dot_dimension_numbers<[1], [0], [0], [1], [0, 0, 1, 1], [], []>} : vector<96x96xbf16>, vector<96x128xbf16>, vector<96x128xf32> -> vector<96x128xf32>
    %c0_4 = arith.constant 0 : index
    %c0_5 = arith.constant 0 : index
    %4 = vector.load %arg4[%c0_4, %c0_5] : memref<96x1xf32, #tpu.memory_space<vmem>>, vector<96x1xf32>
    %5 = vector.broadcast %4 : vector<96x1xf32> to vector<96x128xf32>
    %6 = arith.addf %3, %5 : vector<96x128xf32>
    %c0_6 = arith.constant 0 : index
    %c0_7 = arith.constant 0 : index
    %c0_8 = arith.constant 0 : index
    %7 = vector.load %arg5[%c0_6, %c0_7, %c0_8] : memref<1x96x128xf32, #tpu.memory_space<vmem>>, vector<1x96x128xf32>
    %8 = vector.shape_cast %7 : vector<1x96x128xf32> to vector<96x128xf32>
    %9 = vector.shape_cast %6 : vector<96x128xf32> to vector<1x96x128xf32>
    tpu.vector_store %arg5[%c0_6, %c0_7, %c0_8], %9 {strides = array<i32>} : memref<1x96x128xf32, #tpu.memory_space<vmem>>, vector<1x96x128xf32>,
    return
  }
  func.func @transform_0(%arg0: i32, %arg1: i32) -> (i32, i32, i32) {
    %c0_i32 = arith.constant 0 : i32
    %c0_i32_0 = arith.constant 0 : i32
    return %arg0, %c0_i32, %arg1 : i32, i32, i32
  }
  func.func @transform_1(%arg0: i32, %arg1: i32) -> (i32, i32) {
    %c0_i32 = arith.constant 0 : i32
    %c0_i32_0 = arith.constant 0 : i32
    %c0_i32_1 = arith.constant 0 : i32
    return %c0_i32, %c0_i32_0 : i32, i32
  }
  func.func @transform_2(%arg0: i32, %arg1: i32) -> (i32, i32) {
    %c0_i32 = arith.constant 0 : i32
    %c0_i32_0 = arith.constant 0 : i32
    %c0_i32_1 = arith.constant 0 : i32
    return %c0_i32, %c0_i32_0 : i32, i32
  }
  func.func @transform_3(%arg0: i32, %arg1: i32) -> (i32, i32, i32) {
    %c0_i32 = arith.constant 0 : i32
    %c0_i32_0 = arith.constant 0 : i32
    return %arg0, %c0_i32, %arg1 : i32, i32, i32
  }
}

</mosaic_0001>

<llo_original>
// kernel: tpu_custom_call.1
$region0: #{tpu_custom_call.1}
  #allocation0 [shape = 'u32[]', space=smem, size = 0x4, offset = 0x4, fixed_abs, tag = 'smem constant byte address 0x4 - core index']
  #allocation1 [shape = 'u32[72,128]{1,0:T(1,128)}', space=vmem, size = 0x9000, scoped, tag = 'internal scratch']
  %s0 = inlined_call_operand.vmem [shape: bf16[2,96,128], index: 0, kind: input, shape index: {}]
  %s1 = inlined_call_operand.hbm [shape: bf16[96,96], index: 1, kind: input, shape index: {}]
  %s2 = inlined_call_operand.vmem [shape: f32[96,1], index: 2, kind: input, shape index: {}]
  %s3 = inlined_call_operand.hbm [shape: f32[2,96,128], index: 3, kind: output, shape index: {}]
  %s4 = sld [smem:[#allocation0]]
  $region49: #{tpu_custom_call.1} parent=0
    _
  %s6 = ssub.s32 1, %s4
  %s7 = scalar_select 0, %s6, %s4
  $region1: #{tpu_custom_call.1} parent=0
    #allocation2 [shape = 'u8[24576]{0}', space=vmem, size = 0x6000, scoped, tag = 'input window, operand 1, single buffered']
    #allocation3 [shape = 's32[2]{0}', space=sflag, size = 0x8, scoped, tag = 'scoped memory for tpu_custom_call.1']
    #allocation4 [shape = 's32[2]{0}', space=sflag, size = 0x8, scoped, tag = 'scoped memory for tpu_custom_call.1']
    #allocation5 [shape = 'u8[98304]{0}', space=vmem, size = 0x18000, scoped, tag = 'output window, operand 0']
    %8 = vsyncpa [#allocation3], 0
    %9 = vsyncpa [#allocation4], 0
    %s10 = scalar_lea.sflag [#allocation4], 1
    %11 = vsyncpa %s10, 0
    loop: start=0, step=1, limit=4
    $region2: #{tpu_custom_call.1} parent=1 // loop_pre_header
      _
    $region3: #{tpu_custom_call.1} parent=1 // loop_header
      %s13 = sphi 0, %s17
      %p14 = scmp.ge.s32.totalorder %s13, 4
      %s20 = sphi 0, %s32
      %s21 = sphi 0, %s28
      %s22 = sphi 0, %s20
      %s23 = sphi 0, %s21
      %s24 = sphi 0, %s22
      %s25 = sphi 0, %s23
      %s37 = sphi 0, %s39
      %s40 = sphi 0, %s37
      %s41 = sphi 0, %s40
      %s57 = sphi 0, %s41
      %s61 = sphi 0, %s61
      %s63 = sphi 0, %s61
      %s64 = sphi 0, %s63
      %s78 = sphi 0, %s64
      %s82 = sphi 0, %s82
      %s84 = sphi 0, %s82
      %s85 = sphi 0, %s84
      %s99 = sphi 0, %s85
      %s107 = sphi 0, %s109
      %s110 = sphi 0, %s107
      %s111 = sphi 0, %s110
      %s127 = sphi 0, %s111
    $region4: #{tpu_custom_call.1} parent=1 // loop_header_branch
      %16 = sbr.rel (%p14) target = $region8
    $region5: #{tpu_custom_call.1} parent=1 // loop_body
      %s18 = ssub.s32 %s13, 1
      %s19 = ssub.s32 %s13, 2
      %s26 = sadd.s32 1, %s21
      %p27 = scmp.ge.s32.totalorder %s26, 1
      %s28 = scalar_select %p27, 0, %s26
      %s29 = sadd.s32 1, %s20
      %s30 = scalar_select %p27, %s29, %s20
      %p31 = scmp.ge.s32.totalorder %s30, 2
      %s32 = scalar_select %p31, 0, %s30
      %s33 = ssub.s32 %s20, %s32
      %s34 = ssub.s32 %s21, %s28
      %s35 = sor.u32 %s33, %s34
      %p36 = scmp.eq.s32.totalorder %s35, 0
      %s38 = sadd.s32 %s37, 1
      %s39 = scalar_select %p36, %s37, %s38
      %p42 = pneg %p36
      %p43 = scmp.eq.s32.totalorder %s13, 1
      %p44 = por %p42, %p43
      %p45 = scmp.ne.s32.totalorder %s37, %s40
      %p46 = scmp.eq.s32.totalorder %s13, 0
      %p47 = por %p45, %p46
      %p48 = scmp.ne.s32.totalorder %s37, %s40
      %p49 = scmp.eq.s32.totalorder %s18, 1
      %p50 = por %p48, %p49
      %p51 = scmp.ne.s32.totalorder %s40, %s41
      %p52 = scmp.eq.s32.totalorder %s18, 0
      %p53 = por %p51, %p52
      %p54 = scmp.ne.s32.totalorder %s40, %s41
      %p55 = scmp.eq.s32.totalorder %s19, 1
      %p56 = por %p54, %p55
      %p58 = scmp.ne.s32.totalorder %s41, %s57
      %p59 = scmp.eq.s32.totalorder %s19, 0
      %p60 = por %p58, %p59
      %s62 = sadd.s32 %s61, 1
      %p65 = scmp.eq.s32.totalorder %s13, 1
      %p66 = scmp.ne.s32.totalorder %s61, %s63
      %p67 = scmp.eq.s32.totalorder %s13, 0
      %p68 = por %p66, %p67
      %p69 = scmp.ne.s32.totalorder %s61, %s63
      %p70 = scmp.eq.s32.totalorder %s18, 1
      %p71 = por %p69, %p70
      %p72 = scmp.ne.s32.totalorder %s63, %s64
      %p73 = scmp.eq.s32.totalorder %s18, 0
      %p74 = por %p72, %p73
      %p75 = scmp.ne.s32.totalorder %s63, %s64
      %p76 = scmp.eq.s32.totalorder %s19, 1
      %p77 = por %p75, %p76
      %p79 = scmp.ne.s32.totalorder %s64, %s78
      %p80 = scmp.eq.s32.totalorder %s19, 0
      %p81 = por %p79, %p80
      %s83 = sadd.s32 %s82, 1
      %p86 = scmp.eq.s32.totalorder %s13, 1
      %p87 = scmp.ne.s32.totalorder %s82, %s84
      %p88 = scmp.eq.s32.totalorder %s13, 0
      %p89 = por %p87, %p88
      %p90 = scmp.ne.s32.totalorder %s82, %s84
      %p91 = scmp.eq.s32.totalorder %s18, 1
      %p92 = por %p90, %p91
      %p93 = scmp.ne.s32.totalorder %s84, %s85
      %p94 = scmp.eq.s32.totalorder %s18, 0
      %p95 = por %p93, %p94
      %p96 = scmp.ne.s32.totalorder %s84, %s85
      %p97 = scmp.eq.s32.totalorder %s19, 1
      %p98 = por %p96, %p97
      %p100 = scmp.ne.s32.totalorder %s85, %s99
      %p101 = scmp.eq.s32.totalorder %s19, 0
      %p102 = por %p100, %p101
      %s103 = ssub.s32 %s20, %s32
      %s104 = ssub.s32 %s21, %s28
      %s105 = sor.u32 %s103, %s104
      %p106 = scmp.eq.s32.totalorder %s105, 0
      %s108 = sadd.s32 %s107, 1
      %s109 = scalar_select %p106, %s107, %s108
      %p112 = pneg %p106
      %p113 = scmp.eq.s32.totalorder %s13, 1
      %p114 = por %p112, %p113
      %p115 = scmp.ne.s32.totalorder %s107, %s110
      %p116 = scmp.eq.s32.totalorder %s13, 0
      %p117 = por %p115, %p116
      %p118 = scmp.ne.s32.totalorder %s107, %s110
      %p119 = scmp.eq.s32.totalorder %s18, 1
      %p120 = por %p118, %p119
      %p121 = scmp.ne.s32.totalorder %s110, %s111
      %p122 = scmp.eq.s32.totalorder %s18, 0
      %p123 = por %p121, %p122
      %p124 = scmp.ne.s32.totalorder %s110, %s111
      %p125 = scmp.eq.s32.totalorder %s19, 1
      %p126 = por %p124, %p125
      %p128 = scmp.ne.s32.totalorder %s111, %s127
      %p129 = scmp.eq.s32.totalorder %s19, 0
      %p130 = por %p128, %p129
      %p131 = scmp.le.s32.totalorder 1, %s13
      %p132 = scmp.lt.s32.totalorder %s13, 3
      %p133 = pnand %p131, %p132
      %p134 = pneg %p133
      // Predicated region
      $region9: #{tpu_custom_call.1} parent=5 // pred_check
        _
      $region10: #{tpu_custom_call.1} parent=5 // pred_check_branch
        %136 = sbr.rel (%p133) target = $region12
      $region11: #{tpu_custom_call.1} parent=5 // pred_region
        %s137 = ssub.s32 %s13, 1
        // Predicated region
        $region13: #{tpu_custom_call.1} parent=11 // pred_check
          %p138 = pneg %p74
        $region14: #{tpu_custom_call.1} parent=11 // pred_check_branch
          %140 = sbr.rel (%p138) target = $region16
        $region15: #{tpu_custom_call.1} parent=11 // pred_region
          %142 = vsyncadd [#allocation3], 0
          %s143 = sshll.u32 %s1, 4
          %s144 = int_to_ptr.hbm [resolvable:$true] %s143
          %s145 = sshll.u32 [#allocation2], 4
          %s146 = int_to_ptr.vmem [resolvable:$true] %s145
          %151 = dma.hbm_to_vmem [thread:$0]  %s144, 768, %s146, [#allocation3], 64, 64, 4
        $region16: #{tpu_custom_call.1} parent=11 // pred_fallthru
          _
        // Predicated region
        $region17: #{tpu_custom_call.1} parent=11 // pred_check
          %p152 = pneg %p95
        $region18: #{tpu_custom_call.1} parent=11 // pred_check_branch
          %154 = sbr.rel (%p152) target = $region20
        $region19: #{tpu_custom_call.1} parent=11 // pred_region
          _
        $region20: #{tpu_custom_call.1} parent=11 // pred_fallthru
          _
      $region12: #{tpu_custom_call.1} parent=5 // pred_fallthru
        _
      %p155 = scmp.lt.s32.totalorder %s13, 2
      // Predicated region
      $region21: #{tpu_custom_call.1} parent=5 // pred_check
        %p156 = pneg %p155
      $region22: #{tpu_custom_call.1} parent=5 // pred_check_branch
        %158 = sbr.rel (%p156) target = $region24
      $region23: #{tpu_custom_call.1} parent=5 // pred_region
        // Predicated region
        $region25: #{tpu_custom_call.1} parent=23 // pred_check
          %p159 = pneg %p47
        $region26: #{tpu_custom_call.1} parent=23 // pred_check_branch
          %161 = sbr.rel (%p159) target = $region28
        $region27: #{tpu_custom_call.1} parent=23 // pred_region
          %p162 = scmp.lt.s32.totalorder %s20, 1
          %s163 = scalar_select %p162, %s20, 1
          %p164 = scmp.lt.s32.totalorder %s21, 0
          %s165 = scalar_select %p164, %s21, 0
          %s166 = smul.addr %s163, 12
          %s167 = sadd.s32 %s165, %s166
          %s168 = smul.addr %s167, 4
          %s169 = scalar_lea.vmem %s0, %s168
        $region28: #{tpu_custom_call.1} parent=23 // pred_fallthru
          _
      $region24: #{tpu_custom_call.1} parent=5 // pred_fallthru
        _
      %p170 = scmp.le.s32.totalorder 1, %s13
      %p171 = scmp.lt.s32.totalorder %s13, 3
      %p172 = pnand %p170, %p171
      %p173 = pneg %p172
      // Predicated region
      $region29: #{tpu_custom_call.1} parent=5 // pred_check
        _
      $region30: #{tpu_custom_call.1} parent=5 // pred_check_branch
        %175 = sbr.rel (%p172) target = $region32
      $region31: #{tpu_custom_call.1} parent=5 // pred_region
        %s176 = ssub.s32 %s13, 1
        // Predicated region
        $region33: #{tpu_custom_call.1} parent=31 // pred_check
          %p177 = pneg %p74
        $region34: #{tpu_custom_call.1} parent=31 // pred_check_branch
          %179 = sbr.rel (%p177) target = $region36
        $region35: #{tpu_custom_call.1} parent=31 // pred_region
          %181 = dma.done [#allocation3], 768
        $region36: #{tpu_custom_call.1} parent=31 // pred_fallthru
          _
        %p182 = scmp.lt.s32.totalorder %s22, 1
        %s183 = scalar_select %p182, %s22, 1
        %p184 = scmp.lt.s32.totalorder %s23, 0
        %s185 = scalar_select %p184, %s23, 0
        %s186 = smul.addr %s183, 12
        %s187 = sadd.s32 %s185, %s186
        %s188 = smul.addr %s187, 4
        %s189 = scalar_lea.vmem %s0, %s188
        %p190 = pneg %p53
        %p191 = pneg %p50
        %p192 = pneg %p74
        %p193 = pneg %p71
        %p194 = pneg %p95
        %p195 = pneg %p92
        %p196 = pneg %p123
        %p197 = pneg %p120
        %s198 = sand.u32 %s110, 1
        %s199 = scalar_lea.sflag [#allocation4], %s198
        %s200 = sand.u32 %s110, 1
        %s201 = smul.addr %s200, 96
        %s202 = scalar_lea.vmem [#allocation5], %s201
        %p203 = scmp.lt.s32.totalorder %s22, 1
        %s204 = scalar_select %p203, %s22, 1
        %p205 = scmp.lt.s32.totalorder %s23, 0
        %s206 = scalar_select %p205, %s23, 0
        %s207 = smul.addr %s204, 12
        %s208 = sadd.s32 %s206, %s207
        %s209 = smul.addr %s208, 4
        %s210 = scalar_lea.vmem %s0, %s209
        %v212 = vld [vmem:[#allocation2] sm:$0xf]
        %v213 = vld [vmem:[#allocation2 + $0x4] sm:$0xf]
        %v214 = vld [vmem:[#allocation2 + $0x8] sm:$0xf]
        %v215 = vld [vmem:[#allocation2 + $0xc] sm:$0xf]
        %v216 = vld [vmem:[#allocation2 + $0x10] sm:$0xf]
        %v217 = vld [vmem:[#allocation2 + $0x14] sm:$0xf]
        %v218 = vld [vmem:[#allocation2 + $0x18] sm:$0xf]
        %v219 = vld [vmem:[#allocation2 + $0x1c] sm:$0xf]
        %v220 = vld [vmem:[#allocation2 + $0x20] sm:$0xf]
        %v221 = vld [vmem:[#allocation2 + $0x24] sm:$0xf]
        %v222 = vld [vmem:[#allocation2 + $0x28] sm:$0xf]
        %v223 = vld [vmem:[#allocation2 + $0x2c] sm:$0xf]
        %v224 = vld [vmem:[%s210] sm:$0xf]
        %v225 = vld [vmem:[%s210 + $0x4] sm:$0xf]
        %v226 = vld [vmem:[%s210 + $0x8] sm:$0xf]
        %v227 = vld [vmem:[%s210 + $0xc] sm:$0xf]
        %v228 = vld [vmem:[%s210 + $0x10] sm:$0xf]
        %v229 = vld [vmem:[%s210 + $0x14] sm:$0xf]
        %v230 = vld [vmem:[%s210 + $0x18] sm:$0xf]
        %v231 = vld [vmem:[%s210 + $0x1c] sm:$0xf]
        %v232 = vld [vmem:[%s210 + $0x20] sm:$0xf]
        %v233 = vld [vmem:[%s210 + $0x24] sm:$0xf]
        %v234 = vld [vmem:[%s210 + $0x28] sm:$0xf]
        %v235 = vld [vmem:[%s210 + $0x2c] sm:$0xf]
        %v236 = vld [vmem:[%s2] sm:$0xff]
        %v237 = vld [vmem:[%s2 + $0x8] sm:$0xff]
        %v238 = vld [vmem:[%s2 + $0x10] sm:$0xff]
        %v239 = vld [vmem:[%s2 + $0x18] sm:$0xff]
        %v240 = vld [vmem:[%s2 + $0x20] sm:$0xff]
        %v241 = vld [vmem:[%s2 + $0x28] sm:$0xff]
        %v242 = vld [vmem:[%s2 + $0x30] sm:$0xff]
        %v243 = vld [vmem:[%s2 + $0x38] sm:$0xff]
        %v244 = vld [vmem:[%s2 + $0x40] sm:$0xff]
        %v245 = vld [vmem:[%s2 + $0x48] sm:$0xff]
        %v246 = vld [vmem:[%s2 + $0x50] sm:$0xff]
        %v247 = vld [vmem:[%s2 + $0x58] sm:$0xff]
        %249 = vset.pattern.permute.xlu0 0
        %250 = vperm.xlu0 %249, %v236
        %v251 = vpop.permute.xlu0 %250
        %254 = vset.pattern.permute.xlu0 0
        %255 = vperm.xlu0 %254, %v237
        %v256 = vpop.permute.xlu0 %255
        %259 = vset.pattern.permute.xlu0 0
        %260 = vperm.xlu0 %259, %v238
        %v261 = vpop.permute.xlu0 %260
        %264 = vset.pattern.permute.xlu0 0
        %265 = vperm.xlu0 %264, %v239
        %v266 = vpop.permute.xlu0 %265
        %269 = vset.pattern.permute.xlu0 0
        %270 = vperm.xlu0 %269, %v240
        %v271 = vpop.permute.xlu0 %270
        %274 = vset.pattern.permute.xlu0 0
        %275 = vperm.xlu0 %274, %v241
        %v276 = vpop.permute.xlu0 %275
        %279 = vset.pattern.permute.xlu0 0
        %280 = vperm.xlu0 %279, %v242
        %v281 = vpop.permute.xlu0 %280
        %284 = vset.pattern.permute.xlu0 0
        %285 = vperm.xlu0 %284, %v243
        %v286 = vpop.permute.xlu0 %285
        %289 = vset.pattern.permute.xlu0 0
        %290 = vperm.xlu0 %289, %v244
        %v291 = vpop.permute.xlu0 %290
        %294 = vset.pattern.permute.xlu0 0
        %295 = vperm.xlu0 %294, %v245
        %v296 = vpop.permute.xlu0 %295
        %299 = vset.pattern.permute.xlu0 0
        %300 = vperm.xlu0 %299, %v246
        %v301 = vpop.permute.xlu0 %300
        %304 = vset.pattern.permute.xlu0 0
        %305 = vperm.xlu0 %304, %v247
        %v306 = vpop.permute.xlu0 %305
        %v320 = vunpack.c.l.b16 %v212
        %v321 = vunpack.c.l.b16 %v213
        %v322 = vunpack.c.l.b16 %v214
        %v323 = vunpack.c.l.b16 %v215
        %v324 = vunpack.c.l.b16 %v216
        %v325 = vunpack.c.l.b16 %v217
        %v326 = vunpack.c.l.b16 %v218
        %v327 = vunpack.c.l.b16 %v219
        %v328 = vunpack.c.l.b16 %v220
        %v329 = vunpack.c.l.b16 %v221
        %v330 = vunpack.c.l.b16 %v222
        %v331 = vunpack.c.l.b16 %v223
        %v332 = vpack.c.b16 %v321, %v320
        %v333 = vpack.c.b16 %v323, %v322
        %v334 = vpack.c.b16 %v325, %v324
        %v335 = vpack.c.b16 %v327, %v326
        %v336 = vpack.c.b16 %v329, %v328
        %v337 = vpack.c.b16 %v331, %v330
        %v350 = vunpack.c.l.b16 %v224
        %v351 = vunpack.c.l.b16 %v225
        %v352 = vunpack.c.l.b16 %v226
        %v353 = vunpack.c.l.b16 %v227
        %v354 = vunpack.c.l.b16 %v228
        %v355 = vunpack.c.l.b16 %v229
        %v356 = vunpack.c.l.b16 %v230
        %v357 = vunpack.c.l.b16 %v231
        %v358 = vunpack.c.l.b16 %v232
        %v359 = vunpack.c.l.b16 %v233
        %v360 = vunpack.c.l.b16 %v234
        %v361 = vunpack.c.l.b16 %v235
        %v362 = vpack.c.b16 %v351, %v350
        %v363 = vpack.c.b16 %v353, %v352
        %v364 = vpack.c.b16 %v355, %v354
        %v365 = vpack.c.b16 %v357, %v356
        %v366 = vpack.c.b16 %v359, %v358
        %v367 = vpack.c.b16 %v361, %v360
        %vm374 = vcmask 785408
        %v376 = vsel %vm374, %v332, 0
        %v379 = vsel %vm374, %v333, 0
        %v382 = vsel %vm374, %v334, 0
        %v385 = vsel %vm374, %v335, 0
        %v388 = vsel %vm374, %v336, 0
        %v391 = vsel %vm374, %v337, 0
        %393 = vmatpush.bf16.msra.mxu0 0
        %394 = vmatpush.bf16.msra.mxu0 0
        %395 = vmatpush.bf16.msra.mxu0 %v367
        %396 = vmatpush.bf16.msra.mxu0 %v366
        %397 = vmatpush.bf16.msra.mxu0 %v365
        %398 = vmatpush.bf16.msra.mxu0 %v364
        %399 = vmatpush.bf16.msra.mxu0 %v363
        %400 = vmatpush.bf16.msra.mxu0 %v362
        %401 = vmatmul.bf16.gmra.mxu0 %v376
        %v402 = vpop.f32.mrf.mxu0
        %v403 = vadd.f32 %v251, %v402
        %v404 = vpop.f32.mrf.mxu0
        %v405 = vadd.f32 %v256, %v404
        %406 = vmatmul.bf16.gmra.mxu0 %v379
        %v407 = vpop.f32.mrf.mxu0
        %v408 = vadd.f32 %v261, %v407
        %v409 = vpop.f32.mrf.mxu0
        %v410 = vadd.f32 %v266, %v409
        %411 = vmatmul.bf16.gmra.mxu0 %v382
        %v412 = vpop.f32.mrf.mxu0
        %v413 = vadd.f32 %v271, %v412
        %v414 = vpop.f32.mrf.mxu0
        %v415 = vadd.f32 %v276, %v414
        %416 = vmatmul.bf16.gmra.mxu0 %v385
        %v417 = vpop.f32.mrf.mxu0
        %v418 = vadd.f32 %v281, %v417
        %v419 = vpop.f32.mrf.mxu0
        %v420 = vadd.f32 %v286, %v419
        %421 = vmatmul.bf16.gmra.mxu0 %v388
        %v422 = vpop.f32.mrf.mxu0
        %v423 = vadd.f32 %v291, %v422
        %v424 = vpop.f32.mrf.mxu0
        %v425 = vadd.f32 %v296, %v424
        %426 = vmatmul.bf16.gmra.mxu0 %v391
        %v427 = vpop.f32.mrf.mxu0
        %v428 = vadd.f32 %v301, %v427
        %v429 = vpop.f32.mrf.mxu0
        %v430 = vadd.f32 %v306, %v429
        %431 = vdwg.mxu0
        %432 = vst [vmem:[%s202] sm:$0xff] %v403
        %433 = vst [vmem:[%s202 + $0x8] sm:$0xff] %v405
        %434 = vst [vmem:[%s202 + $0x10] sm:$0xff] %v408
        %435 = vst [vmem:[%s202 + $0x18] sm:$0xff] %v410
        %436 = vst [vmem:[%s202 + $0x20] sm:$0xff] %v413
        %437 = vst [vmem:[%s202 + $0x28] sm:$0xff] %v415
        %438 = vst [vmem:[%s202 + $0x30] sm:$0xff] %v418
        %439 = vst [vmem:[%s202 + $0x38] sm:$0xff] %v420
        %440 = vst [vmem:[%s202 + $0x40] sm:$0xff] %v423
        %441 = vst [vmem:[%s202 + $0x48] sm:$0xff] %v425
        %442 = vst [vmem:[%s202 + $0x50] sm:$0xff] %v428
        %443 = vst [vmem:[%s202 + $0x58] sm:$0xff] %v430
        %s444 = sand.u32 %s110, 1
        %s445 = scalar_lea.sflag [#allocation4], %s444
        %s446 = sand.u32 %s110, 1
        %s447 = smul.addr %s446, 96
        %s448 = scalar_lea.vmem [#allocation5], %s447
        // Predicated region
        $region37: #{tpu_custom_call.1} parent=31 // pred_check
          %p449 = pneg %p120
        $region38: #{tpu_custom_call.1} parent=31 // pred_check_branch
          %451 = sbr.rel (%p449) target = $region40
        $region39: #{tpu_custom_call.1} parent=31 // pred_region
          %453 = vsyncadd %s445, 0
          %s454 = smul.addr %s22, 12
          %s455 = sadd.s32 %s23, %s454
          %s456 = smul.addr %s455, 8
          %s457 = scalar_lea.hbm %s3, %s456
          %s458 = sshll.u32 %s448, 4
          %s459 = int_to_ptr.vmem [resolvable:$true] %s458
          %s460 = sshll.u32 %s457, 4
          %s461 = int_to_ptr.hbm [resolvable:$true] %s460
          %466 = dma.vmem_to_hbm [thread:$0]  %s459, 1536, %s461, %s445, 128, 128, 8
        $region40: #{tpu_custom_call.1} parent=31 // pred_fallthru
          _
      $region32: #{tpu_custom_call.1} parent=5 // pred_fallthru
        _
      %p467 = scmp.le.s32.totalorder 2, %s13
      // Predicated region
      $region41: #{tpu_custom_call.1} parent=5 // pred_check
        %p468 = pneg %p467
      $region42: #{tpu_custom_call.1} parent=5 // pred_check_branch
        %470 = sbr.rel (%p468) target = $region44
      $region43: #{tpu_custom_call.1} parent=5 // pred_region
        %s471 = ssub.s32 %s13, 2
        // Predicated region
        $region45: #{tpu_custom_call.1} parent=43 // pred_check
          %p472 = pneg %p126
        $region46: #{tpu_custom_call.1} parent=43 // pred_check_branch
          %474 = sbr.rel (%p472) target = $region48
        $region47: #{tpu_custom_call.1} parent=43 // pred_region
          %s475 = sand.u32 %s111, 1
          %s476 = scalar_lea.sflag [#allocation4], %s475
          %s477 = sand.u32 %s111, 1
          %s478 = smul.addr %s477, 96
          %s479 = scalar_lea.vmem [#allocation5], %s478
          %481 = dma.done %s476, 1536
        $region48: #{tpu_custom_call.1} parent=43 // pred_fallthru
          _
      $region44: #{tpu_custom_call.1} parent=5 // pred_fallthru
        _
    $region6: #{tpu_custom_call.1} parent=1 // loop_footer
      %s17 = sadd.s32 1, %s13
    $region7: #{tpu_custom_call.1} parent=1 // loop_footer_branch
      %12 = sbr.rel target = $region3
    $region8: #{tpu_custom_call.1} parent=1 // loop_exit
      _
    %482 = vsyncpa [#allocation3], 1
    %s483 = scalar_lea.sflag [#allocation3], 1
    %484 = vsyncpa %s483, 1
    %485 = vsyncpa [#allocation4], 1
    %s486 = scalar_lea.sflag [#allocation4], 1
    %487 = vsyncpa %s486, 1

</llo_original>
